<compile_context>
chip_gen: v6e
topology: v6e:2x2x1
jax: 0.10.0
libtpu: 0.0.40
codegen_flags: <defaults>
</compile_context>

<pallas_src>
import jax
import jax.numpy as jnp
from jax.experimental import pallas as pl
from jax.experimental.pallas import tpu as pltpu


def _round_up(x, m):
    return ((x + m - 1) // m) * m


def _make_kernel(num_layers, seq_len, hidden_size, num_classes, offsets):
    H = hidden_size
    C = num_classes

    def kernel(slab_ref, out_ref, hseq, hn_sc):
        def piece(name):
            r, n, w = offsets[name]          # static python ints
            return slab_ref[pl.ds(r, n), pl.ds(0, w)]

        # Zero the packed, lane-padded output once; partial writes fill it in.
        out_ref[...] = jnp.zeros_like(out_ref)

        layer_in = piece("combo")            # (L, input_size + n_categories)
        for l in range(num_layers):
            wihT = piece(f"wih_{l}")         # (in_l, 4H)
            whhT = piece(f"whh_{l}")         # (H,    4H)
            b = piece(f"b_{l}")              # (1,    4H)  (b_ih + b_hh)

            # Hoisted input projection: no sequential dependence -> one M=L matmul.
            xproj = jnp.dot(layer_in, wihT,
                            preferred_element_type=jnp.float32) + b   # (L, 4H)

            h = jnp.zeros((1, H), jnp.float32)
            c = jnp.zeros((1, H), jnp.float32)
            # seq_len is tiny (== num_layers); Python unroll is fine here.
            for t in range(seq_len):
                gates = xproj[t:t + 1, :] + jnp.dot(
                    h, whhT, preferred_element_type=jnp.float32)       # (1, 4H)
                # Two full-vreg EUP passes instead of four quarter-vreg ones.
                sig = jax.nn.sigmoid(gates)
                th = jnp.tanh(gates)
                i_g = sig[:, 0:H]
                f_g = sig[:, H:2 * H]
                g_g = th[:, 2 * H:3 * H]
                o_g = sig[:, 3 * H:4 * H]
                c = f_g * c + i_g * g_g
                h = o_g * jnp.tanh(c)
                hseq[pl.ds(t, 1), :] = h     # per-step output row into scratch

            hn_sc[pl.ds(l, 1), :] = h        # final h of this layer
            # c_n row goes straight into the packed output slab.
            out_ref[pl.ds(l, 1), pl.ds(C + H, H)] = c
            layer_in = hseq[...]             # (L, H) -> input of next layer

        h_n = hn_sc[...]                     # (num_layers, H)
        out_ref[pl.ds(0, seq_len), pl.ds(C, H)] = h_n

        # fc: (L, H) @ (H, C)
        fc_out = jnp.dot(layer_in, piece("w_fc"),
                         preferred_element_type=jnp.float32) + piece("b_fc")
        # o2o with split weights: equivalent to o2o(cat((h_n, fc_out), 1)),
        # without any lane-axis concatenate.
        logits = (jnp.dot(h_n, piece("w_o2o_h"),
                          preferred_element_type=jnp.float32)
                  + jnp.dot(fc_out, piece("w_o2o_f"),
                            preferred_element_type=jnp.float32)
                  + piece("b_o2o"))                                     # (L, C)
        # TODO(synk): nn.Dropout implemented as eval-mode identity (no RNG mask).
        m = jnp.max(logits, axis=1, keepdims=True)
        lse = m + jnp.log(jnp.sum(jnp.exp(logits - m), axis=1, keepdims=True))
        out_ref[pl.ds(0, seq_len), pl.ds(0, C)] = logits - lse          # LogSoftmax(dim=1)

    return kernel


def rnn_lstm_forward(category, x, params, *, hidden_size, num_layers):
    """Pallas equivalent of RNN_LSTM.forward(category, x, hidden)."""
    L = x.shape[0]
    assert L == num_layers, "torch.cat((h_n, fc(out)), 1) requires seq_len == num_layers"
    H = hidden_size
    C = params["w_fc"].shape[0]  # num_classes

    combo = jnp.concatenate([category, x], axis=1).astype(jnp.float32)
    in0 = combo.shape[1]

    # Pack the input and all parameters into one lane-padded slab -> single DMA.
    PW = _round_up(max(4 * H, C, in0), 128)
    pieces = []
    offsets = {}
    row = 0

    def add(name, arr):
        nonlocal row
        arr = jnp.asarray(arr, jnp.float32)
        offsets[name] = (row, arr.shape[0], arr.shape[1])
        pieces.append(jnp.pad(arr, ((0, 0), (0, PW - arr.shape[1]))))
        row += arr.shape[0]

    add("combo", combo)
    for l in range(num_layers):
        add(f"wih_{l}", params[f"w_ih_{l}"].T)                                    # (in_l, 4H)
        add(f"whh_{l}", params[f"w_hh_{l}"].T)                                    # (H, 4H)
        add(f"b_{l}", (params[f"b_ih_{l}"] + params[f"b_hh_{l}"]).reshape(1, -1))  # (1, 4H)
    add("w_fc", params["w_fc"].T)                                                 # (H, C)
    add("b_fc", params["b_fc"].reshape(1, -1))                                    # (1, C)
    add("w_o2o_h", params["w_o2o"][:, :H].T)                                      # (H, C)
    add("w_o2o_f", params["w_o2o"][:, H:].T)                                      # (C, C)
    add("b_o2o", params["b_o2o"].reshape(1, -1))                                  # (1, C)

    total_rows = _round_up(row, 8)
    slab = jnp.concatenate(pieces, axis=0)
    slab = jnp.pad(slab, ((0, total_rows - row), (0, 0)))                         # (rows, PW)

    # Single lane-dense output slab: [log-probs (C) | h_n (H) | c_n (H) | pad].
    out_width = _round_up(C + 2 * H, 128)

    kernel = _make_kernel(num_layers, L, H, C, offsets)
    vmem = pl.BlockSpec(memory_space=pltpu.MemorySpace.VMEM)
    packed = pl.pallas_call(
        kernel,
        out_shape=jax.ShapeDtypeStruct((L, out_width), jnp.float32),
        in_specs=[vmem],
        out_specs=vmem,
        scratch_shapes=[
            pltpu.VMEM((L, H), jnp.float32),           # per-layer h sequence
            pltpu.VMEM((num_layers, H), jnp.float32),  # h_n accumulator
        ],
    )(slab)

    output = packed[:, 0:C]
    h_n = packed[:, C:C + H]
    c_n = packed[:, C + H:C + 2 * H]
    return output, (h_n, c_n)


def _reference_forward(category, x, params, *, hidden_size, num_layers):
    """Pure-JAX reference mirroring torch semantics (eval-mode dropout)."""
    H = hidden_size
    layer_in = jnp.concatenate([category, x], axis=1).astype(jnp.float32)
    h_list, c_list = [], []
    for l in range(num_layers):
        wihT = params[f"w_ih_{l}"].T
        whhT = params[f"w_hh_{l}"].T
        b = params[f"b_ih_{l}"] + params[f"b_hh_{l}"]
        h = jnp.zeros((H,), jnp.float32)
        c = jnp.zeros((H,), jnp.float32)
        outs = []
        for t in range(layer_in.shape[0]):
            gates = layer_in[t] @ wihT + h @ whhT + b
            i_g = jax.nn.sigmoid(gates[0:H])
            f_g = jax.nn.sigmoid(gates[H:2 * H])
            g_g = jnp.tanh(gates[2 * H:3 * H])
            o_g = jax.nn.sigmoid(gates[3 * H:4 * H])
            c = f_g * c + i_g * g_g
            h = o_g * jnp.tanh(c)
            outs.append(h)
        layer_in = jnp.stack(outs, axis=0)
        h_list.append(h)
        c_list.append(c)
    h_n = jnp.stack(h_list, axis=0)
    c_n = jnp.stack(c_list, axis=0)
    fc_out = layer_in @ params["w_fc"].T + params["b_fc"]
    combined = jnp.concatenate([h_n, fc_out], axis=1)
    logits = combined @ params["w_o2o"].T + params["b_o2o"]
    out = jax.nn.log_softmax(logits, axis=1)
    return out, (h_n, c_n)


def _init_params(key, input_size, n_categories, hidden_size, num_layers):
    """Deterministic, PyTorch-style uniform(-1/sqrt(H), 1/sqrt(H)) init."""
    H = hidden_size
    num_classes = input_size
    params = {}
    k_lstm = 1.0 / jnp.sqrt(jnp.float32(H))
    keys = jax.random.split(key, 4 * num_layers + 4)
    ki = 0
    for l in range(num_layers):
        in_l = (input_size + n_categories) if l == 0 else H
        params[f"w_ih_{l}"] = jax.random.uniform(keys[ki], (4 * H, in_l),
                                                 jnp.float32, -k_lstm, k_lstm); ki += 1
        params[f"w_hh_{l}"] = jax.random.uniform(keys[ki], (4 * H, H),
                                                 jnp.float32, -k_lstm, k_lstm); ki += 1
        params[f"b_ih_{l}"] = jax.random.uniform(keys[ki], (4 * H,),
                                                 jnp.float32, -k_lstm, k_lstm); ki += 1
        params[f"b_hh_{l}"] = jax.random.uniform(keys[ki], (4 * H,),
                                                 jnp.float32, -k_lstm, k_lstm); ki += 1
    k_fc = 1.0 / jnp.sqrt(jnp.float32(H))
    params["w_fc"] = jax.random.uniform(keys[ki], (num_classes, H),
                                        jnp.float32, -k_fc, k_fc); ki += 1
    params["b_fc"] = jax.random.uniform(keys[ki], (num_classes,),
                                        jnp.float32, -k_fc, k_fc); ki += 1
    k_o2o = 1.0 / jnp.sqrt(jnp.float32(H + num_classes))
    params["w_o2o"] = jax.random.uniform(keys[ki], (num_classes, H + num_classes),
                                         jnp.float32, -k_o2o, k_o2o); ki += 1
    params["b_o2o"] = jax.random.uniform(keys[ki], (num_classes,),
                                         jnp.float32, -k_o2o, k_o2o); ki += 1
    return params


if __name__ == "__main__":
    input_size = 16      # == num_classes
    n_categories = 8
    hidden_size = 32
    num_layers = 2
    seq_len = num_layers  # forward's cat((h_n, fc_out), 1) requires this

    key = jax.random.PRNGKey(0)
    k_p, k_c, k_x = jax.random.split(key, 3)
    params = _init_params(k_p, input_size, n_categories, hidden_size, num_layers)
    category = jax.random.normal(k_c, (seq_len, n_categories), jnp.float32)
    x = jax.random.normal(k_x, (seq_len, input_size), jnp.float32)

    out, (h_n, c_n) = rnn_lstm_forward(category, x, params,
                                       hidden_size=hidden_size,
                                       num_layers=num_layers)
    jax.block_until_ready((out, h_n, c_n))

    ref_out, (ref_h, ref_c) = _reference_forward(category, x, params,
                                                 hidden_size=hidden_size,
                                                 num_layers=num_layers)
    assert jnp.allclose(out, ref_out, atol=1e-5, rtol=1e-5)
    assert jnp.allclose(h_n, ref_h, atol=1e-5, rtol=1e-5)
    assert jnp.allclose(c_n, ref_c, atol=1e-5, rtol=1e-5)

    print("KERNEL_OK")
</pallas_src>

<mosaic_0001>
module attributes {stable_mosaic.version = 11 : i64} {
  func.func @kernel(%arg0: memref<208x128xf32, #tpu.memory_space<vmem>>, %arg1: memref<2x128xf32, #tpu.memory_space<vmem>>, %arg2: memref<2x32xf32, #tpu.memory_space<vmem>>, %arg3: memref<2x32xf32, #tpu.memory_space<vmem>>) attributes {dimension_semantics = [], scalar_prefetch = 0 : i64, scratch_operands = 2 : i64, tpu.core_type = #tpu.core_type<tc>} {
    %cst = arith.constant 0.000000e+00 : f32
    %0 = vector.broadcast %cst : f32 to vector<2x128xf32>
    %c0 = arith.constant 0 : index
    %c0_0 = arith.constant 0 : index
    %1 = vector.load %arg1[%c0, %c0_0] : memref<2x128xf32, #tpu.memory_space<vmem>>, vector<2x128xf32>
    tpu.vector_store %arg1[%c0, %c0_0], %0 {strides = array<i32>} : memref<2x128xf32, #tpu.memory_space<vmem>>, vector<2x128xf32>,
    %c0_1 = arith.constant 0 : index
    %c0_2 = arith.constant 0 : index
    %2 = vector.load %arg0[%c0_1, %c0_2] : memref<208x128xf32, #tpu.memory_space<vmem>>, vector<2x24xf32>
    %c2 = arith.constant 2 : index
    %c0_3 = arith.constant 0 : index
    %3 = vector.load %arg0[%c2, %c0_3] : memref<208x128xf32, #tpu.memory_space<vmem>>, vector<24x128xf32>
    %c26 = arith.constant 26 : index
    %c0_4 = arith.constant 0 : index
    %4 = vector.load %arg0[%c26, %c0_4] : memref<208x128xf32, #tpu.memory_space<vmem>>, vector<32x128xf32>
    %c58 = arith.constant 58 : index
    %c0_5 = arith.constant 0 : index
    %5 = vector.load %arg0[%c58, %c0_5] : memref<208x128xf32, #tpu.memory_space<vmem>>, vector<1x128xf32>
    %cst_6 = arith.constant dense<0.000000e+00> : vector<2x128xf32>
    %6 = tpu.matmul %2, %3, %cst_6 {dimension_numbers = #tpu.dot_dimension_numbers<[1], [0], [0], [1], [0, 0, 1, 1], [], []>} : vector<2x24xf32>, vector<24x128xf32>, vector<2x128xf32> -> vector<2x128xf32>
    %7 = vector.broadcast %5 : vector<1x128xf32> to vector<2x128xf32>
    %8 = arith.addf %6, %7 : vector<2x128xf32>
    %cst_7 = arith.constant 0.000000e+00 : f32
    %9 = vector.broadcast %cst_7 : f32 to vector<1x32xf32>
    %cst_8 = arith.constant 0.000000e+00 : f32
    %10 = vector.broadcast %cst_8 : f32 to vector<1x32xf32>
    %11 = vector.extract_strided_slice %8 {offsets = [0, 0], sizes = [1, 128], strides = [1, 1]} : vector<2x128xf32> to vector<1x128xf32>
    %cst_9 = arith.constant dense<0.000000e+00> : vector<1x128xf32>
    %12 = tpu.matmul %9, %4, %cst_9 {dimension_numbers = #tpu.dot_dimension_numbers<[1], [0], [0], [1], [0, 0, 1, 1], [], []>} : vector<1x32xf32>, vector<32x128xf32>, vector<1x128xf32> -> vector<1x128xf32>
    %13 = arith.addf %11, %12 : vector<1x128xf32>
    %14 = arith.negf %13 : vector<1x128xf32>
    %15 = math.exp %14 : vector<1x128xf32>
    %cst_10 = arith.constant 1.000000e+00 : f32
    %16 = vector.broadcast %cst_10 : f32 to vector<1x128xf32>
    %17 = arith.addf %16, %15 : vector<1x128xf32>
    %18 = arith.divf %16, %17 : vector<1x128xf32>
    %19 = math.tanh %13 : vector<1x128xf32>
    %20 = vector.extract_strided_slice %18 {offsets = [0, 0], sizes = [1, 32], strides = [1, 1]} : vector<1x128xf32> to vector<1x32xf32>
    %21 = vector.extract_strided_slice %18 {offsets = [0, 32], sizes = [1, 32], strides = [1, 1]} : vector<1x128xf32> to vector<1x32xf32>
    %22 = vector.extract_strided_slice %19 {offsets = [0, 64], sizes = [1, 32], strides = [1, 1]} : vector<1x128xf32> to vector<1x32xf32>
    %23 = vector.extract_strided_slice %18 {offsets = [0, 96], sizes = [1, 32], strides = [1, 1]} : vector<1x128xf32> to vector<1x32xf32>
    %24 = arith.mulf %21, %10 : vector<1x32xf32>
    %25 = arith.mulf %20, %22 : vector<1x32xf32>
    %26 = arith.addf %24, %25 : vector<1x32xf32>
    %27 = math.tanh %26 : vector<1x32xf32>
    %28 = arith.mulf %23, %27 : vector<1x32xf32>
    %c0_11 = arith.constant 0 : index
    %c0_12 = arith.constant 0 : index
    %29 = vector.load %arg2[%c0_11, %c0_12] : memref<2x32xf32, #tpu.memory_space<vmem>>, vector<1x32xf32>
    tpu.vector_store %arg2[%c0_11, %c0_12], %28 {strides = array<i32>} : memref<2x32xf32, #tpu.memory_space<vmem>>, vector<1x32xf32>,
    %30 = vector.extract_strided_slice %8 {offsets = [1, 0], sizes = [1, 128], strides = [1, 1]} : vector<2x128xf32> to vector<1x128xf32>
    %cst_13 = arith.constant dense<0.000000e+00> : vector<1x128xf32>
    %31 = tpu.matmul %28, %4, %cst_13 {dimension_numbers = #tpu.dot_dimension_numbers<[1], [0], [0], [1], [0, 0, 1, 1], [], []>} : vector<1x32xf32>, vector<32x128xf32>, vector<1x128xf32> -> vector<1x128xf32>
    %32 = arith.addf %30, %31 : vector<1x128xf32>
    %33 = arith.negf %32 : vector<1x128xf32>
    %34 = math.exp %33 : vector<1x128xf32>
    %cst_14 = arith.constant 1.000000e+00 : f32
    %35 = vector.broadcast %cst_14 : f32 to vector<1x128xf32>
    %36 = arith.addf %35, %34 : vector<1x128xf32>
    %37 = arith.divf %35, %36 : vector<1x128xf32>
    %38 = math.tanh %32 : vector<1x128xf32>
    %39 = vector.extract_strided_slice %37 {offsets = [0, 0], sizes = [1, 32], strides = [1, 1]} : vector<1x128xf32> to vector<1x32xf32>
    %40 = vector.extract_strided_slice %37 {offsets = [0, 32], sizes = [1, 32], strides = [1, 1]} : vector<1x128xf32> to vector<1x32xf32>
    %41 = vector.extract_strided_slice %38 {offsets = [0, 64], sizes = [1, 32], strides = [1, 1]} : vector<1x128xf32> to vector<1x32xf32>
    %42 = vector.extract_strided_slice %37 {offsets = [0, 96], sizes = [1, 32], strides = [1, 1]} : vector<1x128xf32> to vector<1x32xf32>
    %43 = arith.mulf %40, %26 : vector<1x32xf32>
    %44 = arith.mulf %39, %41 : vector<1x32xf32>
    %45 = arith.addf %43, %44 : vector<1x32xf32>
    %46 = math.tanh %45 : vector<1x32xf32>
    %47 = arith.mulf %42, %46 : vector<1x32xf32>
    %c1 = arith.constant 1 : index
    %c0_15 = arith.constant 0 : index
    %48 = vector.load %arg2[%c1, %c0_15] : memref<2x32xf32, #tpu.memory_space<vmem>>, vector<1x32xf32>
    tpu.vector_store %arg2[%c1, %c0_15], %47 {strides = array<i32>} : memref<2x32xf32, #tpu.memory_space<vmem>>, vector<1x32xf32>,
    %c0_16 = arith.constant 0 : index
    %c0_17 = arith.constant 0 : index
    %49 = vector.load %arg3[%c0_16, %c0_17] : memref<2x32xf32, #tpu.memory_space<vmem>>, vector<1x32xf32>
    tpu.vector_store %arg3[%c0_16, %c0_17], %47 {strides = array<i32>} : memref<2x32xf32, #tpu.memory_space<vmem>>, vector<1x32xf32>,
    %c0_18 = arith.constant 0 : index
    %c48 = arith.constant 48 : index
    %50 = vector.load %arg1[%c0_18, %c48] : memref<2x128xf32, #tpu.memory_space<vmem>>, vector<1x32xf32>
    tpu.vector_store %arg1[%c0_18, %c48], %45 {strides = array<i32>} : memref<2x128xf32, #tpu.memory_space<vmem>>, vector<1x32xf32>,
    %c0_19 = arith.constant 0 : index
    %c0_20 = arith.constant 0 : index
    %51 = vector.load %arg2[%c0_19, %c0_20] : memref<2x32xf32, #tpu.memory_space<vmem>>, vector<2x32xf32>
    %c59 = arith.constant 59 : index
    %c0_21 = arith.constant 0 : index
    %52 = vector.load %arg0[%c59, %c0_21] : memref<208x128xf32, #tpu.memory_space<vmem>>, vector<32x128xf32>
    %c91 = arith.constant 91 : index
    %c0_22 = arith.constant 0 : index
    %53 = vector.load %arg0[%c91, %c0_22] : memref<208x128xf32, #tpu.memory_space<vmem>>, vector<32x128xf32>
    %c123 = arith.constant 123 : index
    %c0_23 = arith.constant 0 : index
    %54 = vector.load %arg0[%c123, %c0_23] : memref<208x128xf32, #tpu.memory_space<vmem>>, vector<1x128xf32>
    %cst_24 = arith.constant dense<0.000000e+00> : vector<2x128xf32>
    %55 = tpu.matmul %51, %52, %cst_24 {dimension_numbers = #tpu.dot_dimension_numbers<[1], [0], [0], [1], [0, 0, 1, 1], [], []>} : vector<2x32xf32>, vector<32x128xf32>, vector<2x128xf32> -> vector<2x128xf32>
    %56 = vector.broadcast %54 : vector<1x128xf32> to vector<2x128xf32>
    %57 = arith.addf %55, %56 : vector<2x128xf32>
    %cst_25 = arith.constant 0.000000e+00 : f32
    %58 = vector.broadcast %cst_25 : f32 to vector<1x32xf32>
    %cst_26 = arith.constant 0.000000e+00 : f32
    %59 = vector.broadcast %cst_26 : f32 to vector<1x32xf32>
    %60 = vector.extract_strided_slice %57 {offsets = [0, 0], sizes = [1, 128], strides = [1, 1]} : vector<2x128xf32> to vector<1x128xf32>
    %cst_27 = arith.constant dense<0.000000e+00> : vector<1x128xf32>
    %61 = tpu.matmul %58, %53, %cst_27 {dimension_numbers = #tpu.dot_dimension_numbers<[1], [0], [0], [1], [0, 0, 1, 1], [], []>} : vector<1x32xf32>, vector<32x128xf32>, vector<1x128xf32> -> vector<1x128xf32>
    %62 = arith.addf %60, %61 : vector<1x128xf32>
    %63 = arith.negf %62 : vector<1x128xf32>
    %64 = math.exp %63 : vector<1x128xf32>
    %cst_28 = arith.constant 1.000000e+00 : f32
    %65 = vector.broadcast %cst_28 : f32 to vector<1x128xf32>
    %66 = arith.addf %65, %64 : vector<1x128xf32>
    %67 = arith.divf %65, %66 : vector<1x128xf32>
    %68 = math.tanh %62 : vector<1x128xf32>
    %69 = vector.extract_strided_slice %67 {offsets = [0, 0], sizes = [1, 32], strides = [1, 1]} : vector<1x128xf32> to vector<1x32xf32>
    %70 = vector.extract_strided_slice %67 {offsets = [0, 32], sizes = [1, 32], strides = [1, 1]} : vector<1x128xf32> to vector<1x32xf32>
    %71 = vector.extract_strided_slice %68 {offsets = [0, 64], sizes = [1, 32], strides = [1, 1]} : vector<1x128xf32> to vector<1x32xf32>
    %72 = vector.extract_strided_slice %67 {offsets = [0, 96], sizes = [1, 32], strides = [1, 1]} : vector<1x128xf32> to vector<1x32xf32>
    %73 = arith.mulf %70, %59 : vector<1x32xf32>
    %74 = arith.mulf %69, %71 : vector<1x32xf32>
    %75 = arith.addf %73, %74 : vector<1x32xf32>
    %76 = math.tanh %75 : vector<1x32xf32>
    %77 = arith.mulf %72, %76 : vector<1x32xf32>
    %c0_29 = arith.constant 0 : index
    %c0_30 = arith.constant 0 : index
    %78 = vector.load %arg2[%c0_29, %c0_30] : memref<2x32xf32, #tpu.memory_space<vmem>>, vector<1x32xf32>
    tpu.vector_store %arg2[%c0_29, %c0_30], %77 {strides = array<i32>} : memref<2x32xf32, #tpu.memory_space<vmem>>, vector<1x32xf32>,
    %79 = vector.extract_strided_slice %57 {offsets = [1, 0], sizes = [1, 128], strides = [1, 1]} : vector<2x128xf32> to vector<1x128xf32>
    %cst_31 = arith.constant dense<0.000000e+00> : vector<1x128xf32>
    %80 = tpu.matmul %77, %53, %cst_31 {dimension_numbers = #tpu.dot_dimension_numbers<[1], [0], [0], [1], [0, 0, 1, 1], [], []>} : vector<1x32xf32>, vector<32x128xf32>, vector<1x128xf32> -> vector<1x128xf32>
    %81 = arith.addf %79, %80 : vector<1x128xf32>
    %82 = arith.negf %81 : vector<1x128xf32>
    %83 = math.exp %82 : vector<1x128xf32>
    %cst_32 = arith.constant 1.000000e+00 : f32
    %84 = vector.broadcast %cst_32 : f32 to vector<1x128xf32>
    %85 = arith.addf %84, %83 : vector<1x128xf32>
    %86 = arith.divf %84, %85 : vector<1x128xf32>
    %87 = math.tanh %81 : vector<1x128xf32>
    %88 = vector.extract_strided_slice %86 {offsets = [0, 0], sizes = [1, 32], strides = [1, 1]} : vector<1x128xf32> to vector<1x32xf32>
    %89 = vector.extract_strided_slice %86 {offsets = [0, 32], sizes = [1, 32], strides = [1, 1]} : vector<1x128xf32> to vector<1x32xf32>
    %90 = vector.extract_strided_slice %87 {offsets = [0, 64], sizes = [1, 32], strides = [1, 1]} : vector<1x128xf32> to vector<1x32xf32>
    %91 = vector.extract_strided_slice %86 {offsets = [0, 96], sizes = [1, 32], strides = [1, 1]} : vector<1x128xf32> to vector<1x32xf32>
    %92 = arith.mulf %89, %75 : vector<1x32xf32>
    %93 = arith.mulf %88, %90 : vector<1x32xf32>
    %94 = arith.addf %92, %93 : vector<1x32xf32>
    %95 = math.tanh %94 : vector<1x32xf32>
    %96 = arith.mulf %91, %95 : vector<1x32xf32>
    %c1_33 = arith.constant 1 : index
    %c0_34 = arith.constant 0 : index
    %97 = vector.load %arg2[%c1_33, %c0_34] : memref<2x32xf32, #tpu.memory_space<vmem>>, vector<1x32xf32>
    tpu.vector_store %arg2[%c1_33, %c0_34], %96 {strides = array<i32>} : memref<2x32xf32, #tpu.memory_space<vmem>>, vector<1x32xf32>,
    %c1_35 = arith.constant 1 : index
    %c0_36 = arith.constant 0 : index
    %98 = vector.load %arg3[%c1_35, %c0_36] : memref<2x32xf32, #tpu.memory_space<vmem>>, vector<1x32xf32>
    tpu.vector_store %arg3[%c1_35, %c0_36], %96 {strides = array<i32>} : memref<2x32xf32, #tpu.memory_space<vmem>>, vector<1x32xf32>,
    %c1_37 = arith.constant 1 : index
    %c48_38 = arith.constant 48 : index
    %99 = vector.load %arg1[%c1_37, %c48_38] : memref<2x128xf32, #tpu.memory_space<vmem>>, vector<1x32xf32>
    tpu.vector_store %arg1[%c1_37, %c48_38], %94 {strides = array<i32>} : memref<2x128xf32, #tpu.memory_space<vmem>>, vector<1x32xf32>,
    %c0_39 = arith.constant 0 : index
    %c0_40 = arith.constant 0 : index
    %100 = vector.load %arg2[%c0_39, %c0_40] : memref<2x32xf32, #tpu.memory_space<vmem>>, vector<2x32xf32>
    %c0_41 = arith.constant 0 : index
    %c0_42 = arith.constant 0 : index
    %101 = vector.load %arg3[%c0_41, %c0_42] : memref<2x32xf32, #tpu.memory_space<vmem>>, vector<2x32xf32>
    %c0_43 = arith.constant 0 : index
    %c16 = arith.constant 16 : index
    %102 = vector.load %arg1[%c0_43, %c16] : memref<2x128xf32, #tpu.memory_space<vmem>>, vector<2x32xf32>
    tpu.vector_store %arg1[%c0_43, %c16], %101 {strides = array<i32>} : memref<2x128xf32, #tpu.memory_space<vmem>>, vector<2x32xf32>,
    %c124 = arith.constant 124 : index
    %c0_44 = arith.constant 0 : index
    %103 = vector.load %arg0[%c124, %c0_44] : memref<208x128xf32, #tpu.memory_space<vmem>>, vector<32x16xf32>
    %cst_45 = arith.constant dense<0.000000e+00> : vector<2x16xf32>
    %104 = tpu.matmul %100, %103, %cst_45 {dimension_numbers = #tpu.dot_dimension_numbers<[1], [0], [0], [1], [0, 0, 1, 1], [], []>} : vector<2x32xf32>, vector<32x16xf32>, vector<2x16xf32> -> vector<2x16xf32>
    %c156 = arith.constant 156 : index
    %c0_46 = arith.constant 0 : index
    %105 = vector.load %arg0[%c156, %c0_46] : memref<208x128xf32, #tpu.memory_space<vmem>>, vector<1x16xf32>
    %106 = vector.broadcast %105 : vector<1x16xf32> to vector<2x16xf32>
    %107 = arith.addf %104, %106 : vector<2x16xf32>
    %c157 = arith.constant 157 : index
    %c0_47 = arith.constant 0 : index
    %108 = vector.load %arg0[%c157, %c0_47] : memref<208x128xf32, #tpu.memory_space<vmem>>, vector<32x16xf32>
    %cst_48 = arith.constant dense<0.000000e+00> : vector<2x16xf32>
    %109 = tpu.matmul %101, %108, %cst_48 {dimension_numbers = #tpu.dot_dimension_numbers<[1], [0], [0], [1], [0, 0, 1, 1], [], []>} : vector<2x32xf32>, vector<32x16xf32>, vector<2x16xf32> -> vector<2x16xf32>
    %c189 = arith.constant 189 : index
    %c0_49 = arith.constant 0 : index
    %110 = vector.load %arg0[%c189, %c0_49] : memref<208x128xf32, #tpu.memory_space<vmem>>, vector<16x16xf32>
    %cst_50 = arith.constant dense<0.000000e+00> : vector<2x16xf32>
    %111 = tpu.matmul %107, %110, %cst_50 {dimension_numbers = #tpu.dot_dimension_numbers<[1], [0], [0], [1], [0, 0, 1, 1], [], []>} : vector<2x16xf32>, vector<16x16xf32>, vector<2x16xf32> -> vector<2x16xf32>
    %112 = arith.addf %109, %111 : vector<2x16xf32>
    %c205 = arith.constant 205 : index
    %c0_51 = arith.constant 0 : index
    %113 = vector.load %arg0[%c205, %c0_51] : memref<208x128xf32, #tpu.memory_space<vmem>>, vector<1x16xf32>
    %114 = vector.broadcast %113 : vector<1x16xf32> to vector<2x16xf32>
    %115 = arith.addf %112, %114 : vector<2x16xf32>
    %cst_52 = arith.constant dense<0xFF800000> : vector<2xf32>
    %116 = vector.multi_reduction <maximumf>, %115, %cst_52 [1] : vector<2x16xf32> to vector<2xf32>
    %117 = vector.shape_cast %116 : vector<2xf32> to vector<2x1xf32>
    %118 = vector.broadcast %117 : vector<2x1xf32> to vector<2x16xf32>
    %119 = arith.subf %115, %118 : vector<2x16xf32>
    %120 = math.exp %119 : vector<2x16xf32>
    %cst_53 = arith.constant dense<0.000000e+00> : vector<2xf32>
    %121 = vector.multi_reduction <add>, %120, %cst_53 [1] : vector<2x16xf32> to vector<2xf32>
    %122 = vector.shape_cast %121 : vector<2xf32> to vector<2x1xf32>
    %123 = math.log %122 : vector<2x1xf32>
    %124 = arith.addf %117, %123 : vector<2x1xf32>
    %125 = vector.broadcast %124 : vector<2x1xf32> to vector<2x16xf32>
    %126 = arith.subf %115, %125 : vector<2x16xf32>
    %c0_54 = arith.constant 0 : index
    %c0_55 = arith.constant 0 : index
    %127 = vector.load %arg1[%c0_54, %c0_55] : memref<2x128xf32, #tpu.memory_space<vmem>>, vector<2x16xf32>
    tpu.vector_store %arg1[%c0_54, %c0_55], %126 {strides = array<i32>} : memref<2x128xf32, #tpu.memory_space<vmem>>, vector<2x16xf32>,
    return
  }
}

</mosaic_0001>

<llo_original>
// kernel: tpu_custom_call.1
$region0: #{tpu_custom_call.1}
  #allocation0 [shape = 'u32[]', space=smem, size = 0x4, offset = 0x4, fixed_abs, tag = 'smem constant byte address 0x4 - core index']
  #allocation1 [shape = 'u32[144,128]{1,0:T(1,128)}', space=vmem, size = 0x12000, scoped, tag = 'internal scratch']
  #allocation2 [shape = 'f32[2,32]{1,0:T(2,128)}', space=vmem, size = 0x400, scoped, tag = 'scratch operand']
  #allocation3 [shape = 'f32[2,32]{1,0:T(2,128)}', space=vmem, size = 0x400, scoped, tag = 'scratch operand']
  %s0 = inlined_call_operand.hbm [shape: f32[208,128], index: 0, kind: input, shape index: {}]
  %s1 = inlined_call_operand.hbm [shape: f32[2,128], index: 1, kind: output, shape index: {}]
  %s2 = sld [smem:[#allocation0]]
  $region18: #{tpu_custom_call.1} parent=0
    _
  %s4 = ssub.s32 1, %s2
  %s5 = scalar_select 0, %s4, %s2
  $region1: #{tpu_custom_call.1} parent=0
    #allocation4 [shape = 'u8[106496]{0}', space=vmem, size = 0x1a000, scoped, tag = 'input window, operand 0, single buffered']
    #allocation5 [shape = 's32[1]{0}', space=sflag, size = 0x4, scoped, tag = 'scoped memory for tpu_custom_call.1']
    #allocation6 [shape = 's32[1]{0}', space=sflag, size = 0x4, scoped, tag = 'scoped memory for tpu_custom_call.1']
    #allocation7 [shape = 'u8[1024]{0}', space=vmem, size = 0x400, scoped, tag = 'output window, operand 0, single buffered']
    %6 = vsyncpa [#allocation5], 0
    %7 = vsyncpa [#allocation6], 0
    // Predicated region
    $region2: #{tpu_custom_call.1} parent=1 // pred_check
      _
    $region3: #{tpu_custom_call.1} parent=1 // pred_check_branch
      %9 = sbr.rel (0) target = $region5
    $region4: #{tpu_custom_call.1} parent=1 // pred_region
      %s11 = ssub.s32 3328, 3328
      %12 = vsyncadd [#allocation5], %s11
      %s13 = sshll.u32 [#allocation4], 4
      %s14 = int_to_ptr.vmem [resolvable:$true] %s13
      %19 = dma.hbm_to_vmem [thread:$0]  %s0, 3328, %s14, [#allocation5], 128, 128, 8
    $region5: #{tpu_custom_call.1} parent=1 // pred_fallthru
      _
    // Predicated region
    $region6: #{tpu_custom_call.1} parent=1 // pred_check
      _
    $region7: #{tpu_custom_call.1} parent=1 // pred_check_branch
      %21 = sbr.rel (0) target = $region9
    $region8: #{tpu_custom_call.1} parent=1 // pred_region
      %22 = dma.done [#allocation5], 3328
    $region9: #{tpu_custom_call.1} parent=1 // pred_fallthru
      _
    %23 = vst [vmem:[#allocation7] sm:$0x3] 0.0
    %v24 = vld [vmem:[#allocation4] sm:$0x3]
    %v25 = vld [vmem:[#allocation4 + $0x2] sm:$0xff]
    %v26 = vld [vmem:[#allocation4 + $0xa] sm:$0xff]
    %v27 = vld [vmem:[#allocation4 + $0x12] sm:$0xff]
    %v28 = vld [vmem:[#allocation4 + $0x1a] sm:$0xff]
    %v29 = vld [vmem:[#allocation4 + $0x22] sm:$0xff]
    %v30 = vld [vmem:[#allocation4 + $0x2a] sm:$0xff]
    %v31 = vld [vmem:[#allocation4 + $0x32] sm:$0xff]
    %v32 = vld [vmem:[#allocation4 + $0x3a] sm:$0x1]
    %v33 = vlaneseq
    %v34 = vshrl.u32 %v33, 7
    %v35 = vsub.s32 0, %v34
    %v36 = vrot.slane %v32, %v35
    %vm37 = vcmask 195584
    %v39 = vsel %vm37, %v24, 0
    %41 = vmatprep.subr.mxu0 0.0
    %42 = vmatpush1.msra.mxu0 0.0
    %43 = vmatprep.subr.mxu0 0.0
    %44 = vmatpush1.msra.mxu0 0.0
    %45 = vmatprep.subr.mxu0 0.0
    %46 = vmatpush1.msra.mxu0 0.0
    %47 = vmatprep.subr.mxu0 0.0
    %48 = vmatpush1.msra.mxu0 0.0
    %49 = vmatprep.subr.mxu0 0.0
    %50 = vmatpush1.msra.mxu0 0.0
    %51 = vmatprep.subr.mxu0 0.0
    %52 = vmatpush1.msra.mxu0 0.0
    %53 = vmatprep.subr.mxu0 0.0
    %54 = vmatpush1.msra.mxu0 0.0
    %55 = vmatprep.subr.mxu0 0.0
    %56 = vmatpush1.msra.mxu0 0.0
    %57 = vmatprep.subr.mxu0 0.0
    %58 = vmatpush1.msra.mxu0 0.0
    %59 = vmatprep.subr.mxu0 0.0
    %60 = vmatpush1.msra.mxu0 0.0
    %61 = vmatprep.subr.mxu0 0.0
    %62 = vmatpush1.msra.mxu0 0.0
    %63 = vmatprep.subr.mxu0 0.0
    %64 = vmatpush1.msra.mxu0 0.0
    %65 = vmatprep.subr.mxu0 0.0
    %66 = vmatpush1.msra.mxu0 0.0
    %67 = vmatprep.subr.mxu0 0.0
    %68 = vmatpush1.msra.mxu0 %v27
    %69 = vmatprep.subr.mxu0 0.0
    %70 = vmatpush1.msra.mxu0 %v26
    %71 = vmatprep.subr.mxu0 0.0
    %72 = vmatpush1.msra.mxu0 %v25
    %73 = vmatprep.subr.mxu0 0.0
    %74 = vmatpush2.msra.mxu0 0.0
    %75 = vmatprep.subr.mxu0 0.0
    %76 = vmatpush2.msra.mxu0 0.0
    %77 = vmatprep.subr.mxu0 0.0
    %78 = vmatpush2.msra.mxu0 0.0
    %79 = vmatprep.subr.mxu0 0.0
    %80 = vmatpush2.msra.mxu0 0.0
    %81 = vmatprep.subr.mxu0 0.0
    %82 = vmatpush2.msra.mxu0 0.0
    %83 = vmatprep.subr.mxu0 0.0
    %84 = vmatpush2.msra.mxu0 0.0
    %85 = vmatprep.subr.mxu0 0.0
    %86 = vmatpush2.msra.mxu0 0.0
    %87 = vmatprep.subr.mxu0 0.0
    %88 = vmatpush2.msra.mxu0 0.0
    %89 = vmatprep.subr.mxu0 0.0
    %90 = vmatpush2.msra.mxu0 0.0
    %91 = vmatprep.subr.mxu0 0.0
    %92 = vmatpush2.msra.mxu0 0.0
    %93 = vmatprep.subr.mxu0 0.0
    %94 = vmatpush2.msra.mxu0 0.0
    %95 = vmatprep.subr.mxu0 0.0
    %96 = vmatpush2.msra.mxu0 0.0
    %97 = vmatprep.subr.mxu0 0.0
    %98 = vmatpush2.msra.mxu0 0.0
    %99 = vmatprep.subr.mxu0 0.0
    %100 = vmatpush2.msra.mxu0 0.0
    %101 = vmatprep.subr.mxu0 0.0
    %102 = vmatpush2.msra.mxu0 0.0
    %103 = vmatprep.subr.mxu0 0.0
    %104 = vmatpush2.msra.mxu0 0.0
    %105 = vmatprep.mubr.f32.mxu0 0.0
    %106 = vmatmul.mubr.f32.gmra.mxu0 %v39
    %v107 = vpop.f32.mrf.mxu0
    %v108 = vadd.f32 %v36, %v107
    %v109 = vpop.f32.mrf.mxu0
    %110 = vdwg.mxu0
    %vm111 = vcmask 261120
    %v113 = vsel %vm111, 0.0, 0
    %115 = vmatprep.subr.mxu0 0.0
    %116 = vmatpush1.msra.mxu0 0.0
    %117 = vmatprep.subr.mxu0 0.0
    %118 = vmatpush1.msra.mxu0 0.0
    %119 = vmatprep.subr.mxu0 0.0
    %120 = vmatpush1.msra.mxu0 0.0
    %121 = vmatprep.subr.mxu0 0.0
    %122 = vmatpush1.msra.mxu0 0.0
    %123 = vmatprep.subr.mxu0 0.0
    %124 = vmatpush1.msra.mxu0 0.0
    %125 = vmatprep.subr.mxu0 0.0
    %126 = vmatpush1.msra.mxu0 0.0
    %127 = vmatprep.subr.mxu0 0.0
    %128 = vmatpush1.msra.mxu0 0.0
    %129 = vmatprep.subr.mxu0 0.0
    %130 = vmatpush1.msra.mxu0 0.0
    %131 = vmatprep.subr.mxu0 0.0
    %132 = vmatpush1.msra.mxu0 0.0
    %133 = vmatprep.subr.mxu0 0.0
    %134 = vmatpush1.msra.mxu0 0.0
    %135 = vmatprep.subr.mxu0 0.0
    %136 = vmatpush1.msra.mxu0 0.0
    %137 = vmatprep.subr.mxu0 0.0
    %138 = vmatpush1.msra.mxu0 0.0
    %139 = vmatprep.subr.mxu0 0.0
    %140 = vmatpush1.msra.mxu0 %v31
    %141 = vmatprep.subr.mxu0 0.0
    %142 = vmatpush1.msra.mxu0 %v30
    %143 = vmatprep.subr.mxu0 0.0
    %144 = vmatpush1.msra.mxu0 %v29
    %145 = vmatprep.subr.mxu0 0.0
    %146 = vmatpush1.msra.mxu0 %v28
    %147 = vmatprep.subr.mxu0 0.0
    %148 = vmatpush2.msra.mxu0 0.0
    %149 = vmatprep.subr.mxu0 0.0
    %150 = vmatpush2.msra.mxu0 0.0
    %151 = vmatprep.subr.mxu0 0.0
    %152 = vmatpush2.msra.mxu0 0.0
    %153 = vmatprep.subr.mxu0 0.0
    %154 = vmatpush2.msra.mxu0 0.0
    %155 = vmatprep.subr.mxu0 0.0
    %156 = vmatpush2.msra.mxu0 0.0
    %157 = vmatprep.subr.mxu0 0.0
    %158 = vmatpush2.msra.mxu0 0.0
    %159 = vmatprep.subr.mxu0 0.0
    %160 = vmatpush2.msra.mxu0 0.0
    %161 = vmatprep.subr.mxu0 0.0
    %162 = vmatpush2.msra.mxu0 0.0
    %163 = vmatprep.subr.mxu0 0.0
    %164 = vmatpush2.msra.mxu0 0.0
    %165 = vmatprep.subr.mxu0 0.0
    %166 = vmatpush2.msra.mxu0 0.0
    %167 = vmatprep.subr.mxu0 0.0
    %168 = vmatpush2.msra.mxu0 0.0
    %169 = vmatprep.subr.mxu0 0.0
    %170 = vmatpush2.msra.mxu0 0.0
    %171 = vmatprep.subr.mxu0 0.0
    %172 = vmatpush2.msra.mxu0 0.0
    %173 = vmatprep.subr.mxu0 0.0
    %174 = vmatpush2.msra.mxu0 0.0
    %175 = vmatprep.subr.mxu0 0.0
    %176 = vmatpush2.msra.mxu0 0.0
    %177 = vmatprep.subr.mxu0 0.0
    %178 = vmatpush2.msra.mxu0 0.0
    %179 = vmatprep.mubr.f32.mxu0 0.0
    %180 = vmatmul.mubr.f32.gmra.mxu0 %v113
    %v181 = vpop.f32.mrf.mxu0
    %v182 = vadd.f32 0.0, %v181
    %v183 = vpop.f32.mrf.mxu0
    %184 = vdwg.mxu0
    %v185 = vadd.f32 %v108, %v182
    %v186 = vxor.u32 %v185, 2147483648
    %v187 = vmul.f32 %v186, 1.442695
    %v188 = vpow.pop %v187
    %v189 = vadd.f32 %v188, 1.0
    %v190 = vrcp.pop %v189
    %v191 = vmul.f32 1.0, %v190
    %v192 = vtanh.pop %v185
    %v193 = vmul.f32 %v191, 0.0
    %195 = vrot.lane.b32.xlu0 %v192, 64
    %v196 = vpop.permute.xlu0 %195
    %v198 = vmul.f32 %v191, %v196
    %200 = vrot.lane.b32.xlu0 %v198, 32
    %v201 = vpop.permute.xlu0 %200
    %v203 = vadd.f32 %v193, %v201
    %v204 = vtanh.pop %v203
    %206 = vrot.lane.b32.xlu0 %v204, 64
    %v207 = vpop.permute.xlu0 %206
    %v209 = vmul.f32 %v191, %v207
    %211 = vrot.lane.b32.xlu0 %v209, 32
    %v212 = vpop.permute.xlu0 %211
    %vm214 = vcmask 253952
    %215 = vst.msk [vmem:[#allocation2] sm:$0x1] %vm214, %v212
    %v216 = vsel %vm111, %v212, 0
    %218 = vmatprep.subr.mxu0 0.0
    %219 = vmatpush1.msra.mxu0 0.0
    %220 = vmatprep.subr.mxu0 0.0
    %221 = vmatpush1.msra.mxu0 0.0
    %222 = vmatprep.subr.mxu0 0.0
    %223 = vmatpush1.msra.mxu0 0.0
    %224 = vmatprep.subr.mxu0 0.0
    %225 = vmatpush1.msra.mxu0 0.0
    %226 = vmatprep.subr.mxu0 0.0
    %227 = vmatpush1.msra.mxu0 0.0
    %228 = vmatprep.subr.mxu0 0.0
    %229 = vmatpush1.msra.mxu0 0.0
    %230 = vmatprep.subr.mxu0 0.0
    %231 = vmatpush1.msra.mxu0 0.0
    %232 = vmatprep.subr.mxu0 0.0
    %233 = vmatpush1.msra.mxu0 0.0
    %234 = vmatprep.subr.mxu0 0.0
    %235 = vmatpush1.msra.mxu0 0.0
    %236 = vmatprep.subr.mxu0 0.0
    %237 = vmatpush1.msra.mxu0 0.0
    %238 = vmatprep.subr.mxu0 0.0
    %239 = vmatpush1.msra.mxu0 0.0
    %240 = vmatprep.subr.mxu0 0.0
    %241 = vmatpush1.msra.mxu0 0.0
    %242 = vmatprep.subr.mxu0 0.0
    %243 = vmatpush1.msra.mxu0 %v31
    %244 = vmatprep.subr.mxu0 0.0
    %245 = vmatpush1.msra.mxu0 %v30
    %246 = vmatprep.subr.mxu0 0.0
    %247 = vmatpush1.msra.mxu0 %v29
    %248 = vmatprep.subr.mxu0 0.0
    %249 = vmatpush1.msra.mxu0 %v28
    %250 = vmatprep.subr.mxu0 0.0
    %251 = vmatpush2.msra.mxu0 0.0
    %252 = vmatprep.subr.mxu0 0.0
    %253 = vmatpush2.msra.mxu0 0.0
    %254 = vmatprep.subr.mxu0 0.0
    %255 = vmatpush2.msra.mxu0 0.0
    %256 = vmatprep.subr.mxu0 0.0
    %257 = vmatpush2.msra.mxu0 0.0
    %258 = vmatprep.subr.mxu0 0.0
    %259 = vmatpush2.msra.mxu0 0.0
    %260 = vmatprep.subr.mxu0 0.0
    %261 = vmatpush2.msra.mxu0 0.0
    %262 = vmatprep.subr.mxu0 0.0
    %263 = vmatpush2.msra.mxu0 0.0
    %264 = vmatprep.subr.mxu0 0.0
    %265 = vmatpush2.msra.mxu0 0.0
    %266 = vmatprep.subr.mxu0 0.0
    %267 = vmatpush2.msra.mxu0 0.0
    %268 = vmatprep.subr.mxu0 0.0
    %269 = vmatpush2.msra.mxu0 0.0
    %270 = vmatprep.subr.mxu0 0.0
    %271 = vmatpush2.msra.mxu0 0.0
    %272 = vmatprep.subr.mxu0 0.0
    %273 = vmatpush2.msra.mxu0 0.0
    %274 = vmatprep.subr.mxu0 0.0
    %275 = vmatpush2.msra.mxu0 0.0
    %276 = vmatprep.subr.mxu0 0.0
    %277 = vmatpush2.msra.mxu0 0.0
    %278 = vmatprep.subr.mxu0 0.0
    %279 = vmatpush2.msra.mxu0 0.0
    %280 = vmatprep.subr.mxu0 0.0
    %281 = vmatpush2.msra.mxu0 0.0
    %282 = vmatprep.mubr.f32.mxu0 0.0
    %283 = vmatmul.mubr.f32.gmra.mxu0 %v216
    %v284 = vpop.f32.mrf.mxu0
    %v285 = vadd.f32 0.0, %v284
    %v286 = vpop.f32.mrf.mxu0
    %287 = vdwg.mxu0
    %v289 = vrot.slane %v285, 7
    %v291 = vadd.f32 %v108, %v289
    %v292 = vxor.u32 %v291, 2147483648
    %v293 = vmul.f32 %v292, 1.442695
    %v294 = vpow.pop %v293
    %v295 = vadd.f32 %v294, 1.0
    %v296 = vrcp.pop %v295
    %v297 = vmul.f32 1.0, %v296
    %v298 = vtanh.pop %v291
    %v300 = vrot.slane %v203, 7
    %v302 = vmul.f32 %v297, %v300
    %304 = vrot.lane.b32.xlu0 %v298, 64
    %v305 = vpop.permute.xlu0 %304
    %v307 = vmul.f32 %v297, %v305
    %309 = vrot.lane.b32.xlu0 %v307, 32
    %v310 = vpop.permute.xlu0 %309
    %v312 = vadd.f32 %v302, %v310
    %v313 = vtanh.pop %v312
    %315 = vrot.lane.b32.xlu0 %v313, 64
    %v316 = vpop.permute.xlu0 %315
    %v318 = vmul.f32 %v297, %v316
    %320 = vrot.lane.b32.xlu0 %v318, 32
    %v321 = vpop.permute.xlu0 %320
    %vm323 = vcmask 254977
    %324 = vst.msk [vmem:[#allocation2] sm:$0x2] %vm323, %v321
    %325 = vst.msk [vmem:[#allocation3 - $0x1] sm:$0x2] %vm323, %v321
    %327 = vrot.lane.b32.xlu0 %v312, 16
    %v328 = vpop.permute.xlu0 %327
    %vm330 = vcmask 648577
    %331 = vst.msk [vmem:[#allocation7 - $0x1] sm:$0x2] %vm330, %v328
    %v332 = vld [vmem:[#allocation2] sm:$0x3]
    %v333 = vld [vmem:[#allocation4 + $0x3b] sm:$0xff]
    %v334 = vld [vmem:[#allocation4 + $0x43] sm:$0xff]
    %v335 = vld [vmem:[#allocation4 + $0x4b] sm:$0xff]
    %v336 = vld [vmem:[#allocation4 + $0x53] sm:$0xff]
    %v337 = vld [vmem:[#allocation4 + $0x5b] sm:$0xff]
    %v338 = vld [vmem:[#allocation4 + $0x63] sm:$0xff]
    %v339 = vld [vmem:[#allocation4 + $0x6b] sm:$0xff]
    %v340 = vld [vmem:[#allocation4 + $0x73] sm:$0xff]
    %v341 = vld [vmem:[#allocation4 + $0x7b] sm:$0x1]
    %v342 = vlaneseq
    %v343 = vshrl.u32 %v342, 7
    %v344 = vsub.s32 0, %v343
    %v345 = vrot.slane %v341, %v344
    %v347 = vsel %vm111, %v332, 0
    %349 = vmatprep.subr.mxu0 0.0
    %350 = vmatpush1.msra.mxu0 0.0
    %351 = vmatprep.subr.mxu0 0.0
    %352 = vmatpush1.msra.mxu0 0.0
    %353 = vmatprep.subr.mxu0 0.0
    %354 = vmatpush1.msra.mxu0 0.0
    %355 = vmatprep.subr.mxu0 0.0
    %356 = vmatpush1.msra.mxu0 0.0
    %357 = vmatprep.subr.mxu0 0.0
    %358 = vmatpush1.msra.mxu0 0.0
    %359 = vmatprep.subr.mxu0 0.0
    %360 = vmatpush1.msra.mxu0 0.0
    %361 = vmatprep.subr.mxu0 0.0
    %362 = vmatpush1.msra.mxu0 0.0
    %363 = vmatprep.subr.mxu0 0.0
    %364 = vmatpush1.msra.mxu0 0.0
    %365 = vmatprep.subr.mxu0 0.0
    %366 = vmatpush1.msra.mxu0 0.0
    %367 = vmatprep.subr.mxu0 0.0
    %368 = vmatpush1.msra.mxu0 0.0
    %369 = vmatprep.subr.mxu0 0.0
    %370 = vmatpush1.msra.mxu0 0.0
    %371 = vmatprep.subr.mxu0 0.0
    %372 = vmatpush1.msra.mxu0 0.0
    %373 = vmatprep.subr.mxu0 0.0
    %374 = vmatpush1.msra.mxu0 %v336
    %375 = vmatprep.subr.mxu0 0.0
    %376 = vmatpush1.msra.mxu0 %v335
    %377 = vmatprep.subr.mxu0 0.0
    %378 = vmatpush1.msra.mxu0 %v334
    %379 = vmatprep.subr.mxu0 0.0
    %380 = vmatpush1.msra.mxu0 %v333
    %381 = vmatprep.subr.mxu0 0.0
    %382 = vmatpush2.msra.mxu0 0.0
    %383 = vmatprep.subr.mxu0 0.0
    %384 = vmatpush2.msra.mxu0 0.0
    %385 = vmatprep.subr.mxu0 0.0
    %386 = vmatpush2.msra.mxu0 0.0
    %387 = vmatprep.subr.mxu0 0.0
    %388 = vmatpush2.msra.mxu0 0.0
    %389 = vmatprep.subr.mxu0 0.0
    %390 = vmatpush2.msra.mxu0 0.0
    %391 = vmatprep.subr.mxu0 0.0
    %392 = vmatpush2.msra.mxu0 0.0
    %393 = vmatprep.subr.mxu0 0.0
    %394 = vmatpush2.msra.mxu0 0.0
    %395 = vmatprep.subr.mxu0 0.0
    %396 = vmatpush2.msra.mxu0 0.0
    %397 = vmatprep.subr.mxu0 0.0
    %398 = vmatpush2.msra.mxu0 0.0
    %399 = vmatprep.subr.mxu0 0.0
    %400 = vmatpush2.msra.mxu0 0.0
    %401 = vmatprep.subr.mxu0 0.0
    %402 = vmatpush2.msra.mxu0 0.0
    %403 = vmatprep.subr.mxu0 0.0
    %404 = vmatpush2.msra.mxu0 0.0
    %405 = vmatprep.subr.mxu0 0.0
    %406 = vmatpush2.msra.mxu0 0.0
    %407 = vmatprep.subr.mxu0 0.0
    %408 = vmatpush2.msra.mxu0 0.0
    %409 = vmatprep.subr.mxu0 0.0
    %410 = vmatpush2.msra.mxu0 0.0
    %411 = vmatprep.subr.mxu0 0.0
    %412 = vmatpush2.msra.mxu0 0.0
    %413 = vmatprep.mubr.f32.mxu0 0.0
    %414 = vmatmul.mubr.f32.gmra.mxu0 %v347
    %v415 = vpop.f32.mrf.mxu0
    %v416 = vadd.f32 %v345, %v415
    %v417 = vpop.f32.mrf.mxu0
    %418 = vdwg.mxu0
    %419 = vmatprep.subr.mxu0 0.0
    %420 = vmatpush1.msra.mxu0 0.0
    %421 = vmatprep.subr.mxu0 0.0
    %422 = vmatpush1.msra.mxu0 0.0
    %423 = vmatprep.subr.mxu0 0.0
    %424 = vmatpush1.msra.mxu0 0.0
    %425 = vmatprep.subr.mxu0 0.0
    %426 = vmatpush1.msra.mxu0 0.0
    %427 = vmatprep.subr.mxu0 0.0
    %428 = vmatpush1.msra.mxu0 0.0
    %429 = vmatprep.subr.mxu0 0.0
    %430 = vmatpush1.msra.mxu0 0.0
    %431 = vmatprep.subr.mxu0 0.0
    %432 = vmatpush1.msra.mxu0 0.0
    %433 = vmatprep.subr.mxu0 0.0
    %434 = vmatpush1.msra.mxu0 0.0
    %435 = vmatprep.subr.mxu0 0.0
    %436 = vmatpush1.msra.mxu0 0.0
    %437 = vmatprep.subr.mxu0 0.0
    %438 = vmatpush1.msra.mxu0 0.0
    %439 = vmatprep.subr.mxu0 0.0
    %440 = vmatpush1.msra.mxu0 0.0
    %441 = vmatprep.subr.mxu0 0.0
    %442 = vmatpush1.msra.mxu0 0.0
    %443 = vmatprep.subr.mxu0 0.0
    %444 = vmatpush1.msra.mxu0 %v340
    %445 = vmatprep.subr.mxu0 0.0
    %446 = vmatpush1.msra.mxu0 %v339
    %447 = vmatprep.subr.mxu0 0.0
    %448 = vmatpush1.msra.mxu0 %v338
    %449 = vmatprep.subr.mxu0 0.0
    %450 = vmatpush1.msra.mxu0 %v337
    %451 = vmatprep.subr.mxu0 0.0
    %452 = vmatpush2.msra.mxu0 0.0
    %453 = vmatprep.subr.mxu0 0.0
    %454 = vmatpush2.msra.mxu0 0.0
    %455 = vmatprep.subr.mxu0 0.0
    %456 = vmatpush2.msra.mxu0 0.0
    %457 = vmatprep.subr.mxu0 0.0
    %458 = vmatpush2.msra.mxu0 0.0
    %459 = vmatprep.subr.mxu0 0.0
    %460 = vmatpush2.msra.mxu0 0.0
    %461 = vmatprep.subr.mxu0 0.0
    %462 = vmatpush2.msra.mxu0 0.0
    %463 = vmatprep.subr.mxu0 0.0
    %464 = vmatpush2.msra.mxu0 0.0
    %465 = vmatprep.subr.mxu0 0.0
    %466 = vmatpush2.msra.mxu0 0.0
    %467 = vmatprep.subr.mxu0 0.0
    %468 = vmatpush2.msra.mxu0 0.0
    %469 = vmatprep.subr.mxu0 0.0
    %470 = vmatpush2.msra.mxu0 0.0
    %471 = vmatprep.subr.mxu0 0.0
    %472 = vmatpush2.msra.mxu0 0.0
    %473 = vmatprep.subr.mxu0 0.0
    %474 = vmatpush2.msra.mxu0 0.0
    %475 = vmatprep.subr.mxu0 0.0
    %476 = vmatpush2.msra.mxu0 0.0
    %477 = vmatprep.subr.mxu0 0.0
    %478 = vmatpush2.msra.mxu0 0.0
    %479 = vmatprep.subr.mxu0 0.0
    %480 = vmatpush2.msra.mxu0 0.0
    %481 = vmatprep.subr.mxu0 0.0
    %482 = vmatpush2.msra.mxu0 0.0
    %483 = vmatprep.mubr.f32.mxu0 0.0
    %484 = vmatmul.mubr.f32.gmra.mxu0 %v113
    %v485 = vpop.f32.mrf.mxu0
    %v486 = vadd.f32 0.0, %v485
    %v487 = vpop.f32.mrf.mxu0
    %488 = vdwg.mxu0
    %v489 = vadd.f32 %v416, %v486
    %v490 = vxor.u32 %v489, 2147483648
    %v491 = vmul.f32 %v490, 1.442695
    %v492 = vpow.pop %v491
    %v493 = vadd.f32 %v492, 1.0
    %v494 = vrcp.pop %v493
    %v495 = vmul.f32 1.0, %v494
    %v496 = vtanh.pop %v489
    %v497 = vmul.f32 %v495, 0.0
    %499 = vrot.lane.b32.xlu0 %v496, 64
    %v500 = vpop.permute.xlu0 %499
    %v502 = vmul.f32 %v495, %v500
    %504 = vrot.lane.b32.xlu0 %v502, 32
    %v505 = vpop.permute.xlu0 %504
    %v507 = vadd.f32 %v497, %v505
    %v508 = vtanh.pop %v507
    %510 = vrot.lane.b32.xlu0 %v508, 64
    %v511 = vpop.permute.xlu0 %510
    %v513 = vmul.f32 %v495, %v511
    %515 = vrot.lane.b32.xlu0 %v513, 32
    %v516 = vpop.permute.xlu0 %515
    %518 = vst.msk [vmem:[#allocation2] sm:$0x1] %vm214, %v516
    %v519 = vsel %vm111, %v516, 0
    %521 = vmatprep.subr.mxu0 0.0
    %522 = vmatpush1.msra.mxu0 0.0
    %523 = vmatprep.subr.mxu0 0.0
    %524 = vmatpush1.msra.mxu0 0.0
    %525 = vmatprep.subr.mxu0 0.0
    %526 = vmatpush1.msra.mxu0 0.0
    %527 = vmatprep.subr.mxu0 0.0
    %528 = vmatpush1.msra.mxu0 0.0
    %529 = vmatprep.subr.mxu0 0.0
    %530 = vmatpush1.msra.mxu0 0.0
    %531 = vmatprep.subr.mxu0 0.0
    %532 = vmatpush1.msra.mxu0 0.0
    %533 = vmatprep.subr.mxu0 0.0
    %534 = vmatpush1.msra.mxu0 0.0
    %535 = vmatprep.subr.mxu0 0.0
    %536 = vmatpush1.msra.mxu0 0.0
    %537 = vmatprep.subr.mxu0 0.0
    %538 = vmatpush1.msra.mxu0 0.0
    %539 = vmatprep.subr.mxu0 0.0
    %540 = vmatpush1.msra.mxu0 0.0
    %541 = vmatprep.subr.mxu0 0.0
    %542 = vmatpush1.msra.mxu0 0.0
    %543 = vmatprep.subr.mxu0 0.0
    %544 = vmatpush1.msra.mxu0 0.0
    %545 = vmatprep.subr.mxu0 0.0
    %546 = vmatpush1.msra.mxu0 %v340
    %547 = vmatprep.subr.mxu0 0.0
    %548 = vmatpush1.msra.mxu0 %v339
    %549 = vmatprep.subr.mxu0 0.0
    %550 = vmatpush1.msra.mxu0 %v338
    %551 = vmatprep.subr.mxu0 0.0
    %552 = vmatpush1.msra.mxu0 %v337
    %553 = vmatprep.subr.mxu0 0.0
    %554 = vmatpush2.msra.mxu0 0.0
    %555 = vmatprep.subr.mxu0 0.0
    %556 = vmatpush2.msra.mxu0 0.0
    %557 = vmatprep.subr.mxu0 0.0
    %558 = vmatpush2.msra.mxu0 0.0
    %559 = vmatprep.subr.mxu0 0.0
    %560 = vmatpush2.msra.mxu0 0.0
    %561 = vmatprep.subr.mxu0 0.0
    %562 = vmatpush2.msra.mxu0 0.0
    %563 = vmatprep.subr.mxu0 0.0
    %564 = vmatpush2.msra.mxu0 0.0
    %565 = vmatprep.subr.mxu0 0.0
    %566 = vmatpush2.msra.mxu0 0.0
    %567 = vmatprep.subr.mxu0 0.0
    %568 = vmatpush2.msra.mxu0 0.0
    %569 = vmatprep.subr.mxu0 0.0
    %570 = vmatpush2.msra.mxu0 0.0
    %571 = vmatprep.subr.mxu0 0.0
    %572 = vmatpush2.msra.mxu0 0.0
    %573 = vmatprep.subr.mxu0 0.0
    %574 = vmatpush2.msra.mxu0 0.0
    %575 = vmatprep.subr.mxu0 0.0
    %576 = vmatpush2.msra.mxu0 0.0
    %577 = vmatprep.subr.mxu0 0.0
    %578 = vmatpush2.msra.mxu0 0.0
    %579 = vmatprep.subr.mxu0 0.0
    %580 = vmatpush2.msra.mxu0 0.0
    %581 = vmatprep.subr.mxu0 0.0
    %582 = vmatpush2.msra.mxu0 0.0
    %583 = vmatprep.subr.mxu0 0.0
    %584 = vmatpush2.msra.mxu0 0.0
    %585 = vmatprep.mubr.f32.mxu0 0.0
    %586 = vmatmul.mubr.f32.gmra.mxu0 %v519
    %v587 = vpop.f32.mrf.mxu0
    %v588 = vadd.f32 0.0, %v587
    %v589 = vpop.f32.mrf.mxu0
    %590 = vdwg.mxu0
    %v592 = vrot.slane %v588, 7
    %v594 = vadd.f32 %v416, %v592
    %v595 = vxor.u32 %v594, 2147483648
    %v596 = vmul.f32 %v595, 1.442695
    %v597 = vpow.pop %v596
    %v598 = vadd.f32 %v597, 1.0
    %v599 = vrcp.pop %v598
    %v600 = vmul.f32 1.0, %v599
    %v601 = vtanh.pop %v594
    %v603 = vrot.slane %v507, 7
    %v605 = vmul.f32 %v600, %v603
    %607 = vrot.lane.b32.xlu0 %v601, 64
    %v608 = vpop.permute.xlu0 %607
    %v610 = vmul.f32 %v600, %v608
    %612 = vrot.lane.b32.xlu0 %v610, 32
    %v613 = vpop.permute.xlu0 %612
    %v615 = vadd.f32 %v605, %v613
    %v616 = vtanh.pop %v615
    %618 = vrot.lane.b32.xlu0 %v616, 64
    %v619 = vpop.permute.xlu0 %618
    %v621 = vmul.f32 %v600, %v619
    %623 = vrot.lane.b32.xlu0 %v621, 32
    %v624 = vpop.permute.xlu0 %623
    %626 = vst.msk [vmem:[#allocation2] sm:$0x2] %vm323, %v624
    %627 = vst.msk [vmem:[#allocation3] sm:$0x2] %vm323, %v624
    %629 = vrot.lane.b32.xlu0 %v615, 16
    %v630 = vpop.permute.xlu0 %629
    %632 = vst.msk [vmem:[#allocation7] sm:$0x2] %vm330, %v630
    %v633 = vld [vmem:[#allocation2] sm:$0x3]
    %v634 = vld [vmem:[#allocation3] sm:$0x3]
    %636 = vrot.lane.b32.xlu0 %v634, 16
    %v637 = vpop.permute.xlu0 %636
    %vm639 = vcmask 386176
    %640 = vst.msk [vmem:[#allocation7] sm:$0x3] %vm639, %v637
    %v641 = vld [vmem:[#allocation4 + $0x7c] sm:$0xff]
    %v642 = vld [vmem:[#allocation4 + $0x84] sm:$0xff]
    %v643 = vld [vmem:[#allocation4 + $0x8c] sm:$0xff]
    %v644 = vld [vmem:[#allocation4 + $0x94] sm:$0xff]
    %v645 = vld [vmem:[#allocation4 + $0x9c] sm:$0x1]
    %v646 = vlaneseq
    %v647 = vshrl.u32 %v646, 7
    %v648 = vsub.s32 0, %v647
    %v649 = vrot.slane %v645, %v648
    %v651 = vsel %vm111, %v633, 0
    %653 = vmatprep.subr.mxu0 0.0
    %654 = vmatpush1.msra.mxu0 0.0
    %655 = vmatprep.subr.mxu0 0.0
    %656 = vmatpush1.msra.mxu0 0.0
    %657 = vmatprep.subr.mxu0 0.0
    %658 = vmatpush1.msra.mxu0 0.0
    %659 = vmatprep.subr.mxu0 0.0
    %660 = vmatpush1.msra.mxu0 0.0
    %661 = vmatprep.subr.mxu0 0.0
    %662 = vmatpush1.msra.mxu0 0.0
    %663 = vmatprep.subr.mxu0 0.0
    %664 = vmatpush1.msra.mxu0 0.0
    %665 = vmatprep.subr.mxu0 0.0
    %666 = vmatpush1.msra.mxu0 0.0
    %667 = vmatprep.subr.mxu0 0.0
    %668 = vmatpush1.msra.mxu0 0.0
    %669 = vmatprep.subr.mxu0 0.0
    %670 = vmatpush1.msra.mxu0 0.0
    %671 = vmatprep.subr.mxu0 0.0
    %672 = vmatpush1.msra.mxu0 0.0
    %673 = vmatprep.subr.mxu0 0.0
    %674 = vmatpush1.msra.mxu0 0.0
    %675 = vmatprep.subr.mxu0 0.0
    %676 = vmatpush1.msra.mxu0 0.0
    %677 = vmatprep.subr.mxu0 0.0
    %678 = vmatpush1.msra.mxu0 %v644
    %679 = vmatprep.subr.mxu0 0.0
    %680 = vmatpush1.msra.mxu0 %v643
    %681 = vmatprep.subr.mxu0 0.0
    %682 = vmatpush1.msra.mxu0 %v642
    %683 = vmatprep.subr.mxu0 0.0
    %684 = vmatpush1.msra.mxu0 %v641
    %685 = vmatprep.subr.mxu0 0.0
    %686 = vmatpush2.msra.mxu0 0.0
    %687 = vmatprep.subr.mxu0 0.0
    %688 = vmatpush2.msra.mxu0 0.0
    %689 = vmatprep.subr.mxu0 0.0
    %690 = vmatpush2.msra.mxu0 0.0
    %691 = vmatprep.subr.mxu0 0.0
    %692 = vmatpush2.msra.mxu0 0.0
    %693 = vmatprep.subr.mxu0 0.0
    %694 = vmatpush2.msra.mxu0 0.0
    %695 = vmatprep.subr.mxu0 0.0
    %696 = vmatpush2.msra.mxu0 0.0
    %697 = vmatprep.subr.mxu0 0.0
    %698 = vmatpush2.msra.mxu0 0.0
    %699 = vmatprep.subr.mxu0 0.0
    %700 = vmatpush2.msra.mxu0 0.0
    %701 = vmatprep.subr.mxu0 0.0
    %702 = vmatpush2.msra.mxu0 0.0
    %703 = vmatprep.subr.mxu0 0.0
    %704 = vmatpush2.msra.mxu0 0.0
    %705 = vmatprep.subr.mxu0 0.0
    %706 = vmatpush2.msra.mxu0 0.0
    %707 = vmatprep.subr.mxu0 0.0
    %708 = vmatpush2.msra.mxu0 0.0
    %709 = vmatprep.subr.mxu0 0.0
    %710 = vmatpush2.msra.mxu0 0.0
    %711 = vmatprep.subr.mxu0 0.0
    %712 = vmatpush2.msra.mxu0 0.0
    %713 = vmatprep.subr.mxu0 0.0
    %714 = vmatpush2.msra.mxu0 0.0
    %715 = vmatprep.subr.mxu0 0.0
    %716 = vmatpush2.msra.mxu0 0.0
    %717 = vmatprep.mubr.f32.mxu0 0.0
    %718 = vmatmul.mubr.f32.gmra.mxu0 %v651
    %v719 = vpop.f32.mrf.mxu0
    %v720 = vadd.f32 %v649, %v719
    %v721 = vpop.f32.mrf.mxu0
    %722 = vdwg.mxu0
    %v723 = vld [vmem:[#allocation4 + $0x9d] sm:$0xff]
    %v724 = vld [vmem:[#allocation4 + $0xa5] sm:$0xff]
    %v725 = vld [vmem:[#allocation4 + $0xad] sm:$0xff]
    %v726 = vld [vmem:[#allocation4 + $0xb5] sm:$0xff]
    %v727 = vld [vmem:[#allocation4 + $0xbd] sm:$0xff]
    %v728 = vld [vmem:[#allocation4 + $0xc5] sm:$0xff]
    %vm729 = vcmask 130048
    %v731 = vsel %vm729, %v720, 0
    %733 = vmatprep.subr.mxu0 0.0
    %734 = vmatpush1.msra.mxu0 0.0
    %735 = vmatprep.subr.mxu0 0.0
    %736 = vmatpush1.msra.mxu0 0.0
    %737 = vmatprep.subr.mxu0 0.0
    %738 = vmatpush1.msra.mxu0 0.0
    %739 = vmatprep.subr.mxu0 0.0
    %740 = vmatpush1.msra.mxu0 0.0
    %741 = vmatprep.subr.mxu0 0.0
    %742 = vmatpush1.msra.mxu0 0.0
    %743 = vmatprep.subr.mxu0 0.0
    %744 = vmatpush1.msra.mxu0 0.0
    %745 = vmatprep.subr.mxu0 0.0
    %746 = vmatpush1.msra.mxu0 0.0
    %747 = vmatprep.subr.mxu0 0.0
    %748 = vmatpush1.msra.mxu0 0.0
    %749 = vmatprep.subr.mxu0 0.0
    %750 = vmatpush1.msra.mxu0 0.0
    %751 = vmatprep.subr.mxu0 0.0
    %752 = vmatpush1.msra.mxu0 0.0
    %753 = vmatprep.subr.mxu0 0.0
    %754 = vmatpush1.msra.mxu0 0.0
    %755 = vmatprep.subr.mxu0 0.0
    %756 = vmatpush1.msra.mxu0 0.0
    %757 = vmatprep.subr.mxu0 0.0
    %758 = vmatpush1.msra.mxu0 0.0
    %759 = vmatprep.subr.mxu0 0.0
    %760 = vmatpush1.msra.mxu0 0.0
    %761 = vmatprep.subr.mxu0 0.0
    %762 = vmatpush1.msra.mxu0 %v728
    %763 = vmatprep.subr.mxu0 0.0
    %764 = vmatpush1.msra.mxu0 %v727
    %765 = vmatprep.subr.mxu0 0.0
    %766 = vmatpush2.msra.mxu0 0.0
    %767 = vmatprep.subr.mxu0 0.0
    %768 = vmatpush2.msra.mxu0 0.0
    %769 = vmatprep.subr.mxu0 0.0
    %770 = vmatpush2.msra.mxu0 0.0
    %771 = vmatprep.subr.mxu0 0.0
    %772 = vmatpush2.msra.mxu0 0.0
    %773 = vmatprep.subr.mxu0 0.0
    %774 = vmatpush2.msra.mxu0 0.0
    %775 = vmatprep.subr.mxu0 0.0
    %776 = vmatpush2.msra.mxu0 0.0
    %777 = vmatprep.subr.mxu0 0.0
    %778 = vmatpush2.msra.mxu0 0.0
    %779 = vmatprep.subr.mxu0 0.0
    %780 = vmatpush2.msra.mxu0 0.0
    %781 = vmatprep.subr.mxu0 0.0
    %782 = vmatpush2.msra.mxu0 0.0
    %783 = vmatprep.subr.mxu0 0.0
    %784 = vmatpush2.msra.mxu0 0.0
    %785 = vmatprep.subr.mxu0 0.0
    %786 = vmatpush2.msra.mxu0 0.0
    %787 = vmatprep.subr.mxu0 0.0
    %788 = vmatpush2.msra.mxu0 0.0
    %789 = vmatprep.subr.mxu0 0.0
    %790 = vmatpush2.msra.mxu0 0.0
    %791 = vmatprep.subr.mxu0 0.0
    %792 = vmatpush2.msra.mxu0 0.0
    %793 = vmatprep.subr.mxu0 0.0
    %794 = vmatpush2.msra.mxu0 0.0
    %795 = vmatprep.subr.mxu0 0.0
    %796 = vmatpush2.msra.mxu0 0.0
    %797 = vmatprep.mubr.f32.mxu0 0.0
    %798 = vmatmul.mubr.f32.gmra.mxu0 %v731
    %v799 = vpop.f32.mrf.mxu0
    %v800 = vadd.f32 0.0, %v799
    %v801 = vpop.f32.mrf.mxu0
    %802 = vdwg.mxu0
    %v803 = vsel %vm111, %v634, 0
    %805 = vmatprep.subr.mxu0 0.0
    %806 = vmatpush1.msra.mxu0 0.0
    %807 = vmatprep.subr.mxu0 0.0
    %808 = vmatpush1.msra.mxu0 0.0
    %809 = vmatprep.subr.mxu0 0.0
    %810 = vmatpush1.msra.mxu0 0.0
    %811 = vmatprep.subr.mxu0 0.0
    %812 = vmatpush1.msra.mxu0 0.0
    %813 = vmatprep.subr.mxu0 0.0
    %814 = vmatpush1.msra.mxu0 0.0
    %815 = vmatprep.subr.mxu0 0.0
    %816 = vmatpush1.msra.mxu0 0.0
    %817 = vmatprep.subr.mxu0 0.0
    %818 = vmatpush1.msra.mxu0 0.0
    %819 = vmatprep.subr.mxu0 0.0
    %820 = vmatpush1.msra.mxu0 0.0
    %821 = vmatprep.subr.mxu0 0.0
    %822 = vmatpush1.msra.mxu0 0.0
    %823 = vmatprep.subr.mxu0 0.0
    %824 = vmatpush1.msra.mxu0 0.0
    %825 = vmatprep.subr.mxu0 0.0
    %826 = vmatpush1.msra.mxu0 0.0
    %827 = vmatprep.subr.mxu0 0.0
    %828 = vmatpush1.msra.mxu0 0.0
    %829 = vmatprep.subr.mxu0 0.0
    %830 = vmatpush1.msra.mxu0 %v726
    %831 = vmatprep.subr.mxu0 0.0
    %832 = vmatpush1.msra.mxu0 %v725
    %833 = vmatprep.subr.mxu0 0.0
    %834 = vmatpush1.msra.mxu0 %v724
    %835 = vmatprep.subr.mxu0 0.0
    %836 = vmatpush1.msra.mxu0 %v723
    %837 = vmatprep.subr.mxu0 0.0
    %838 = vmatpush2.msra.mxu0 0.0
    %839 = vmatprep.subr.mxu0 0.0
    %840 = vmatpush2.msra.mxu0 0.0
    %841 = vmatprep.subr.mxu0 0.0
    %842 = vmatpush2.msra.mxu0 0.0
    %843 = vmatprep.subr.mxu0 0.0
    %844 = vmatpush2.msra.mxu0 0.0
    %845 = vmatprep.subr.mxu0 0.0
    %846 = vmatpush2.msra.mxu0 0.0
    %847 = vmatprep.subr.mxu0 0.0
    %848 = vmatpush2.msra.mxu0 0.0
    %849 = vmatprep.subr.mxu0 0.0
    %850 = vmatpush2.msra.mxu0 0.0
    %851 = vmatprep.subr.mxu0 0.0
    %852 = vmatpush2.msra.mxu0 0.0
    %853 = vmatprep.subr.mxu0 0.0
    %854 = vmatpush2.msra.mxu0 0.0
    %855 = vmatprep.subr.mxu0 0.0
    %856 = vmatpush2.msra.mxu0 0.0
    %857 = vmatprep.subr.mxu0 0.0
    %858 = vmatpush2.msra.mxu0 0.0
    %859 = vmatprep.subr.mxu0 0.0
    %860 = vmatpush2.msra.mxu0 0.0
    %861 = vmatprep.subr.mxu0 0.0
    %862 = vmatpush2.msra.mxu0 0.0
    %863 = vmatprep.subr.mxu0 0.0
    %864 = vmatpush2.msra.mxu0 0.0
    %865 = vmatprep.subr.mxu0 0.0
    %866 = vmatpush2.msra.mxu0 0.0
    %867 = vmatprep.subr.mxu0 0.0
    %868 = vmatpush2.msra.mxu0 0.0
    %869 = vmatprep.mubr.f32.mxu0 0.0
    %870 = vmatmul.mubr.f32.gmra.mxu0 %v803
    %v871 = vpop.f32.mrf.mxu0
    %v872 = vadd.f32 %v800, %v871
    %v873 = vpop.f32.mrf.mxu0
    %874 = vdwg.mxu0
    %v875 = vld [vmem:[#allocation4 + $0xcd] sm:$0x1]
    %v876 = vlaneseq
    %v877 = vshrl.u32 %v876, 7
    %v878 = vsub.s32 0, %v877
    %v879 = vrot.slane %v875, %v878
    %v880 = vadd.f32 %v872, %v879
    %vm881 = vcmask 123904
    %v882 = vsel %vm881, %v880, -inf
    %883 = vmax.xlane.f32.xlu0 %v882
    %v884 = vpop.xlane.xlu0 %883
    %v885 = vsub.f32 %v880, %v884
    %v886 = vmul.f32 %v885, 1.442695
    %v887 = vpow.pop %v886
    %v888 = vsel %vm881, %v887, 0.0
    %889 = vadd.xlane.f32.xlu0 %v888
    %v890 = vpop.xlane.xlu0 %889
    %v891 = vlog2.pop %v890
    %v892 = vmul.f32 %v891, 0.6931472
    %v893 = vadd.f32 %v884, %v892
    %v894 = vsub.f32 %v880, %v893
    %895 = vst.msk [vmem:[#allocation7] sm:$0x3] %vm881, %v894
    // Predicated region
    $region10: #{tpu_custom_call.1} parent=1 // pred_check
      _
    $region11: #{tpu_custom_call.1} parent=1 // pred_check_branch
      %897 = sbr.rel (0) target = $region13
    $region12: #{tpu_custom_call.1} parent=1 // pred_region
      %s899 = ssub.s32 32, 32
      %900 = vsyncadd [#allocation6], %s899
      %s902 = sshll.u32 [#allocation7], 4
      %s903 = int_to_ptr.vmem [resolvable:$true] %s902
      %905 = dma.vmem_to_hbm [thread:$0]  %s903, 32, %s1, [#allocation6]
    $region13: #{tpu_custom_call.1} parent=1 // pred_fallthru
      _
    // Predicated region
    $region14: #{tpu_custom_call.1} parent=1 // pred_check
      _
    $region15: #{tpu_custom_call.1} parent=1 // pred_check_branch
      %907 = sbr.rel (0) target = $region17
    $region16: #{tpu_custom_call.1} parent=1 // pred_region
      %908 = dma.done [#allocation6], 32
    $region17: #{tpu_custom_call.1} parent=1 // pred_fallthru
      _
    %909 = vsyncpa [#allocation5], 1
    %910 = vsyncpa [#allocation6], 1

</llo_original>
